<compile_context>
chip_gen: v5e
topology: v5e:2x2
jax: 0.10.0
libtpu: 0.0.40
codegen_flags: <defaults>
</compile_context>

<pallas_src>
import functools

import jax
import jax.numpy as jnp
from jax.experimental import pallas as pl
from jax.experimental.pallas import tpu as pltpu

block_size = 8
n_embd = 32
vocab_size = 65  # e.g. tiny-shakespeare char vocab

_NEG = jnp.float32(-1e30)  # pad value for unused vocab lanes (never -inf)


def _bigram_kernel(ids_ref, tok_tab_ref, pos_tab_ref, logits_ref, loss_ref):
    BT = ids_ref.shape[0]          # true number of rows (B*T) at these shapes
    Vp = tok_tab_ref.shape[1]      # lane-padded vocab (128)
    Tb = pos_tab_ref.shape[0]      # block_size

    ids = ids_ref[...]             # (BT, 2) int32: [:,0]=idx, [:,1]=targets
    idx = ids[:, 0:1]              # (BT, 1)
    tgt = ids[:, 1:2]              # (BT, 1)

    # Single lane iota reused for token one-hot and target gather.
    lane_iota = jax.lax.broadcasted_iota(jnp.int32, (BT, Vp), 1)   # (BT, Vp)
    tok_oh = (lane_iota == idx).astype(jnp.float32)                # (BT, Vp)

    # Positions r % T computed in-kernel (no pos input DMA).
    row_iota = jax.lax.broadcasted_iota(jnp.int32, (BT, Tb), 0)
    col_iota = jax.lax.broadcasted_iota(jnp.int32, (BT, Tb), 1)
    if (Tb & (Tb - 1)) == 0:                       # power of two -> AND
        pos_vals = jnp.bitwise_and(row_iota, Tb - 1)
    else:
        pos_vals = row_iota % Tb
    pos_oh = (col_iota == pos_vals).astype(jnp.float32)            # (BT, Tb)

    # logits = tok_logit[idx] + (pos_logit + b)[pos]   -- two independent
    # one-hot matmuls on the MXU, lane-dense 128-wide output.
    logits = (jnp.dot(tok_oh, tok_tab_ref[...],
                      preferred_element_type=jnp.float32)
              + jnp.dot(pos_oh, pos_tab_ref[...],
                        preferred_element_type=jnp.float32))        # (BT, Vp)
    logits_ref[...] = logits

    # Cross entropy, mean over the true B*T rows.  Padded vocab lanes hold
    # -1e30: they never win the max and exp underflows to exactly 0.
    m = jnp.max(logits, axis=-1, keepdims=True)
    lse = m + jnp.log(jnp.sum(jnp.exp(logits - m), axis=-1, keepdims=True))
    tgt_oh = (lane_iota == tgt).astype(jnp.float32)
    tgt_logit = jnp.sum(tgt_oh * logits, axis=-1, keepdims=True)
    loss_ref[0, 0] = jnp.sum(lse - tgt_logit) / BT


@functools.partial(jax.jit, static_argnames=())
def bigram_forward(idx, targets, tok_table, pos_table, w_head_t, b_head):
    """Returns (logits[(B*T, V)], loss[scalar]) like the PyTorch module with targets."""
    B, T = idx.shape
    BT = B * T
    V = tok_table.shape[0]
    Vp = pl.cdiv(V, 128) * 128     # lane-dense padded vocab

    hi = jax.lax.Precision.HIGHEST
    w = w_head_t.astype(jnp.float32)
    # Fused tables (tiny one-time cost; in a real training/generation loop
    # these are constants and would be precomputed/hoisted).
    tok_logit = jnp.dot(tok_table.astype(jnp.float32), w, precision=hi)           # (V, V)
    pos_logit = jnp.dot(pos_table.astype(jnp.float32), w, precision=hi) + b_head  # (T, V)

    tok_pad = jnp.zeros((Vp, Vp), jnp.float32).at[:V, :V].set(tok_logit)
    pos_pad = jnp.full((T, Vp), _NEG, jnp.float32).at[:, :V].set(pos_logit)

    # Pack idx and targets into a single int32 input (one DMA).
    ids = jnp.concatenate(
        [idx.reshape(BT, 1).astype(jnp.int32),
         targets.reshape(BT, 1).astype(jnp.int32)], axis=1)          # (BT, 2)

    vmem = pl.BlockSpec(memory_space=pltpu.MemorySpace.VMEM)
    smem = pl.BlockSpec(memory_space=pltpu.MemorySpace.SMEM)
    logits_pad, loss = pl.pallas_call(
        _bigram_kernel,
        out_shape=(jax.ShapeDtypeStruct((BT, Vp), jnp.float32),
                   jax.ShapeDtypeStruct((1, 1), jnp.float32)),
        in_specs=[vmem, vmem, vmem],
        out_specs=(vmem, smem),
    )(ids, tok_pad, pos_pad)
    # TODO(synk): add a grid over BT row-blocks (dimension_semantics=("parallel",))
    # if BT is ever scaled up (v7x megacore / VMEM budget); unnecessary at BT=16.
    return logits_pad[:, :V], loss[0, 0]


def _reference(idx, targets, tok_table, pos_table, w_head_t, b_head):
    B, T = idx.shape
    hi = jax.lax.Precision.HIGHEST
    tok_emb = tok_table[idx]                               # (B, T, E)
    pos_emb = pos_table[jnp.arange(T)][None, :, :]         # (1, T, E)
    x = tok_emb + pos_emb
    logits = jnp.dot(x, w_head_t, precision=hi) + b_head   # (B, T, V)
    logits = logits.reshape(B * T, -1)
    tgt = targets.reshape(B * T)
    lse = jax.scipy.special.logsumexp(logits, axis=-1)
    loss = jnp.mean(lse - logits[jnp.arange(B * T), tgt])
    return logits, loss


if __name__ == "__main__":
    key = jax.random.PRNGKey(0)
    k1, k2, k3, k4, k5, k6 = jax.random.split(key, 6)

    B, T = 2, block_size

    # Deterministic parameter init (nn.Embedding ~ N(0,1); nn.Linear ~ U small).
    tok_table = jax.random.normal(k1, (vocab_size, n_embd), jnp.float32)
    pos_table = jax.random.normal(k2, (block_size, n_embd), jnp.float32)
    bound = 1.0 / (n_embd ** 0.5)
    w_head = jax.random.uniform(k3, (vocab_size, n_embd), jnp.float32, -bound, bound)
    b_head = jax.random.uniform(k4, (vocab_size,), jnp.float32, -bound, bound)
    w_head_t = w_head.T                                     # (n_embd, vocab_size)

    # Deterministic example inputs.
    idx = jax.random.randint(k5, (B, T), 0, vocab_size, dtype=jnp.int32)
    targets = jax.random.randint(k6, (B, T), 0, vocab_size, dtype=jnp.int32)

    logits, loss = bigram_forward(idx, targets, tok_table, pos_table, w_head_t, b_head)
    jax.block_until_ready((logits, loss))

    ref_logits, ref_loss = _reference(idx, targets, tok_table, pos_table, w_head_t, b_head)
    assert logits.shape == (B * T, vocab_size)
    assert jnp.allclose(logits, ref_logits, atol=1e-4, rtol=1e-4)
    assert jnp.allclose(loss, ref_loss, atol=1e-4, rtol=1e-4)

    print("KERNEL_OK")
</pallas_src>

<mosaic_0001>
module attributes {stable_mosaic.version = 11 : i64} {
  func.func @_bigram_kernel(%arg0: memref<16x2xi32, #tpu.memory_space<vmem>>, %arg1: memref<128x128xf32, #tpu.memory_space<vmem>>, %arg2: memref<8x128xf32, #tpu.memory_space<vmem>>, %arg3: memref<16x128xf32, #tpu.memory_space<vmem>>, %arg4: memref<1x1xf32, #tpu.memory_space<smem>>) attributes {dimension_semantics = [], scalar_prefetch = 0 : i64, scratch_operands = 0 : i64, tpu.core_type = #tpu.core_type<tc>} {
    %c0 = arith.constant 0 : index
    %c0_0 = arith.constant 0 : index
    %0 = vector.load %arg0[%c0, %c0_0] : memref<16x2xi32, #tpu.memory_space<vmem>>, vector<16x2xi32>
    %1 = vector.extract_strided_slice %0 {offsets = [0, 0], sizes = [16, 1], strides = [1, 1]} : vector<16x2xi32> to vector<16x1xi32>
    %2 = vector.extract_strided_slice %0 {offsets = [0, 1], sizes = [16, 1], strides = [1, 1]} : vector<16x2xi32> to vector<16x1xi32>
    %3 = tpu.iota {dimensions = array<i32: 1>} : vector<16x128xi32>
    %4 = vector.broadcast %1 : vector<16x1xi32> to vector<16x128xi32>
    %5 = arith.cmpi eq, %3, %4 : vector<16x128xi32>
    %6 = arith.extui %5 : vector<16x128xi1> to vector<16x128xi32>
    %7 = arith.sitofp %6 : vector<16x128xi32> to vector<16x128xf32>
    %8 = tpu.iota {dimensions = array<i32: 0>} : vector<16x8xi32>
    %9 = tpu.iota {dimensions = array<i32: 1>} : vector<16x8xi32>
    %c7_i32 = arith.constant 7 : i32
    %10 = vector.broadcast %c7_i32 : i32 to vector<16x8xi32>
    %11 = arith.andi %8, %10 : vector<16x8xi32>
    %12 = arith.cmpi eq, %9, %11 : vector<16x8xi32>
    %13 = arith.extui %12 : vector<16x8xi1> to vector<16x8xi32>
    %14 = arith.sitofp %13 : vector<16x8xi32> to vector<16x8xf32>
    %c0_1 = arith.constant 0 : index
    %c0_2 = arith.constant 0 : index
    %15 = vector.load %arg1[%c0_1, %c0_2] : memref<128x128xf32, #tpu.memory_space<vmem>>, vector<128x128xf32>
    %cst = arith.constant dense<0.000000e+00> : vector<16x128xf32>
    %16 = tpu.matmul %7, %15, %cst {dimension_numbers = #tpu.dot_dimension_numbers<[1], [0], [0], [1], [0, 0, 1, 1], [], []>} : vector<16x128xf32>, vector<128x128xf32>, vector<16x128xf32> -> vector<16x128xf32>
    %c0_3 = arith.constant 0 : index
    %c0_4 = arith.constant 0 : index
    %17 = vector.load %arg2[%c0_3, %c0_4] : memref<8x128xf32, #tpu.memory_space<vmem>>, vector<8x128xf32>
    %cst_5 = arith.constant dense<0.000000e+00> : vector<16x128xf32>
    %18 = tpu.matmul %14, %17, %cst_5 {dimension_numbers = #tpu.dot_dimension_numbers<[1], [0], [0], [1], [0, 0, 1, 1], [], []>} : vector<16x8xf32>, vector<8x128xf32>, vector<16x128xf32> -> vector<16x128xf32>
    %19 = arith.addf %16, %18 : vector<16x128xf32>
    %c0_6 = arith.constant 0 : index
    %c0_7 = arith.constant 0 : index
    %20 = vector.load %arg3[%c0_6, %c0_7] : memref<16x128xf32, #tpu.memory_space<vmem>>, vector<16x128xf32>
    tpu.vector_store %arg3[%c0_6, %c0_7], %19 {strides = array<i32>} : memref<16x128xf32, #tpu.memory_space<vmem>>, vector<16x128xf32>,
    %cst_8 = arith.constant dense<0xFF800000> : vector<16xf32>
    %21 = vector.multi_reduction <maximumf>, %19, %cst_8 [1] : vector<16x128xf32> to vector<16xf32>
    %22 = vector.shape_cast %21 : vector<16xf32> to vector<16x1xf32>
    %23 = vector.broadcast %22 : vector<16x1xf32> to vector<16x128xf32>
    %24 = arith.subf %19, %23 : vector<16x128xf32>
    %25 = math.exp %24 : vector<16x128xf32>
    %cst_9 = arith.constant dense<0.000000e+00> : vector<16xf32>
    %26 = vector.multi_reduction <add>, %25, %cst_9 [1] : vector<16x128xf32> to vector<16xf32>
    %27 = vector.shape_cast %26 : vector<16xf32> to vector<16x1xf32>
    %28 = math.log %27 : vector<16x1xf32>
    %29 = arith.addf %22, %28 : vector<16x1xf32>
    %30 = vector.broadcast %2 : vector<16x1xi32> to vector<16x128xi32>
    %31 = arith.cmpi eq, %3, %30 : vector<16x128xi32>
    %32 = arith.extui %31 : vector<16x128xi1> to vector<16x128xi32>
    %33 = arith.sitofp %32 : vector<16x128xi32> to vector<16x128xf32>
    %34 = arith.mulf %33, %19 : vector<16x128xf32>
    %cst_10 = arith.constant dense<0.000000e+00> : vector<16xf32>
    %35 = vector.multi_reduction <add>, %34, %cst_10 [1] : vector<16x128xf32> to vector<16xf32>
    %36 = vector.shape_cast %35 : vector<16xf32> to vector<16x1xf32>
    %37 = arith.subf %29, %36 : vector<16x1xf32>
    %38 = vector.shape_cast %37 : vector<16x1xf32> to vector<1x16x1xf32>
    %cst_11 = arith.constant dense<0.000000e+00> : vector<1xf32>
    %39 = vector.multi_reduction <add>, %38, %cst_11 [1, 2] : vector<1x16x1xf32> to vector<1xf32>
    %40 = vector.shape_cast %39 : vector<1xf32> to vector<1x1x1xf32>
    %41 = vector.extract %40[0, 0, 0] : f32 from vector<1x1x1xf32>
    %cst_12 = arith.constant 1.600000e+01 : f32
    %42 = arith.divf %41, %cst_12 : f32
    %c0_13 = arith.constant 0 : index
    %c0_14 = arith.constant 0 : index
    %43 = memref.load %arg4[%c0_13, %c0_14] : memref<1x1xf32, #tpu.memory_space<smem>>
    memref.store %42, %arg4[%c0_13, %c0_14] : memref<1x1xf32, #tpu.memory_space<smem>>
    return
  }
}

</mosaic_0001>

<llo_original>
// kernel: bigram_forward.1
$region0: #{bigram_forward.1}
  #allocation0 [shape = 'u32[]', space=smem, size = 0x4, offset = 0x4, fixed_abs, tag = 'smem constant byte address 0x4 - core index']
  #allocation1 [shape = 'u32[72,128]{1,0:T(1,128)}', space=vmem, size = 0x9000, scoped, tag = 'internal scratch']
  %s0 = inlined_call_operand.vmem [shape: s32[16,2], index: 0, kind: input, shape index: {}]
  %s1 = inlined_call_operand.vmem [shape: f32[128,128], index: 1, kind: input, shape index: {}]
  %s2 = inlined_call_operand.vmem [shape: f32[8,128], index: 2, kind: input, shape index: {}]
  %s3 = inlined_call_operand.hbm [shape: f32[16,128], index: 3, kind: output, shape index: {0}]
  %s4 = inlined_call_operand.hbm [shape: f32[1,1], index: 4, kind: output, shape index: {1}]
  %5 = xla_tuple %s3, %s4
  %s6 = sld [smem:[#allocation0]]
  $region30: #{bigram_forward.1} parent=0
    _
  %s8 = ssub.s32 1, %s6
  %s9 = scalar_select 0, %s8, %s6
  $region1: #{bigram_forward.1} parent=0
    #allocation2 [shape = 'u8[8192]{0}', space=vmem, size = 0x2000, scoped, tag = 'output window, operand 0, single buffered']
    #allocation3 [shape = 's32[1]{0}', space=sflag, size = 0x4, scoped, tag = 'scoped memory for bigram_forward.1']
    #allocation4 [shape = 's32[1]{0}', space=sflag, size = 0x4, scoped, tag = 'scoped memory for bigram_forward.1']
    #allocation5 [shape = 'u8[512]{0}', space=smem, size = 0x200, scoped, tag = 'output window, operand 1, single buffered']
    %10 = vsyncpa [#allocation3], 0
    %11 = vsyncpa [#allocation4], 0
    // Predicated region
    $region2: #{bigram_forward.1} parent=1 // pred_check
      _
    $region3: #{bigram_forward.1} parent=1 // pred_check_branch
      %13 = sbr.rel (0) target = $region5
    $region4: #{bigram_forward.1} parent=1 // pred_region
      _
    $region5: #{bigram_forward.1} parent=1 // pred_fallthru
      _
    // Predicated region
    $region6: #{bigram_forward.1} parent=1 // pred_check
      _
    $region7: #{bigram_forward.1} parent=1 // pred_check_branch
      %15 = sbr.rel (0) target = $region9
    $region8: #{bigram_forward.1} parent=1 // pred_region
      _
    $region9: #{bigram_forward.1} parent=1 // pred_fallthru
      _
    // Predicated region
    $region10: #{bigram_forward.1} parent=1 // pred_check
      _
    $region11: #{bigram_forward.1} parent=1 // pred_check_branch
      %17 = sbr.rel (0) target = $region13
    $region12: #{bigram_forward.1} parent=1 // pred_region
      _
    $region13: #{bigram_forward.1} parent=1 // pred_fallthru
      _
    %v18 = vld [vmem:[%s0] sm:$0xff]
    %v19 = vld [vmem:[%s0 + $0x8] sm:$0xff]
    %v20 = vlaneseq
    %v21 = vand.u32 %v20, 127
    %22 = vset.pattern.permute.xlu0 0
    %23 = vperm.xlu0 %22, %v18
    %v24 = vpop.permute.xlu0 %23
    %25 = vset.pattern.permute.xlu0 0
    %26 = vperm.xlu0 %25, %v19
    %v27 = vpop.permute.xlu0 %26
    %vm28 = vcmp.eq.s32.totalorder %v21, %v24
    %vm29 = vcmp.eq.s32.totalorder %v21, %v27
    %v30 = vsel %vm28, 1, 0
    %v31 = vsel %vm29, 1, 0
    %v32 = vcvt.s32.f32 %v30
    %v33 = vcvt.s32.f32 %v31
    %v34 = vlaneseq
    %v35 = vshrl.u32 %v34, 7
    %v36 = vadd.s32 %v35, 8
    %v37 = vand.u32 %v35, 7
    %v38 = vand.u32 %v36, 7
    %vm39 = vcmp.eq.s32.totalorder %v21, %v37
    %vm40 = vcmp.eq.s32.totalorder %v21, %v38
    %v41 = vsel %vm39, 1, 0
    %v42 = vsel %vm40, 1, 0
    %v43 = vcvt.s32.f32 %v41
    %v44 = vcvt.s32.f32 %v42
    %v45 = vld [vmem:[%s1] sm:$0xff]
    %v46 = vld [vmem:[%s1 + $0x8] sm:$0xff]
    %v47 = vld [vmem:[%s1 + $0x10] sm:$0xff]
    %v48 = vld [vmem:[%s1 + $0x18] sm:$0xff]
    %v49 = vld [vmem:[%s1 + $0x20] sm:$0xff]
    %v50 = vld [vmem:[%s1 + $0x28] sm:$0xff]
    %v51 = vld [vmem:[%s1 + $0x30] sm:$0xff]
    %v52 = vld [vmem:[%s1 + $0x38] sm:$0xff]
    %v53 = vld [vmem:[%s1 + $0x40] sm:$0xff]
    %v54 = vld [vmem:[%s1 + $0x48] sm:$0xff]
    %v55 = vld [vmem:[%s1 + $0x50] sm:$0xff]
    %v56 = vld [vmem:[%s1 + $0x58] sm:$0xff]
    %v57 = vld [vmem:[%s1 + $0x60] sm:$0xff]
    %v58 = vld [vmem:[%s1 + $0x68] sm:$0xff]
    %v59 = vld [vmem:[%s1 + $0x70] sm:$0xff]
    %v60 = vld [vmem:[%s1 + $0x78] sm:$0xff]
    %v61 = vld [vmem:[%s2] sm:$0xff]
    %vm62 = vcmask 64512
    %v64 = vsel %vm62, %v43, 0
    %v67 = vsel %vm62, %v44, 0
    %69 = vmatpush.msra.mxu0 0.0
    %70 = vmatpush.msra.mxu0 0.0
    %71 = vmatpush.msra.mxu0 0.0
    %72 = vmatpush.msra.mxu0 0.0
    %73 = vmatpush.msra.mxu0 0.0
    %74 = vmatpush.msra.mxu0 0.0
    %75 = vmatpush.msra.mxu0 0.0
    %76 = vmatpush.msra.mxu0 0.0
    %77 = vmatpush.msra.mxu0 0.0
    %78 = vmatpush.msra.mxu0 0.0
    %79 = vmatpush.msra.mxu0 0.0
    %80 = vmatpush.msra.mxu0 0.0
    %81 = vmatpush.msra.mxu0 0.0
    %82 = vmatpush.msra.mxu0 0.0
    %83 = vmatpush.msra.mxu0 0.0
    %84 = vmatpush.msra.mxu0 %v61
    %85 = vmatmul.f32.gmra.mxu0 %v64
    %v86 = vpop.f32.mrf.mxu0
    %v87 = vadd.f32 0.0, %v86
    %88 = vmatmul.f32.gmra.mxu0 %v67
    %v89 = vpop.f32.mrf.mxu0
    %v90 = vadd.f32 0.0, %v89
    %91 = vdwg.mxu0
    %92 = vmatpush.msra.mxu0 %v60
    %93 = vmatpush.msra.mxu0 %v59
    %94 = vmatpush.msra.mxu0 %v58
    %95 = vmatpush.msra.mxu0 %v57
    %96 = vmatpush.msra.mxu0 %v56
    %97 = vmatpush.msra.mxu0 %v55
    %98 = vmatpush.msra.mxu0 %v54
    %99 = vmatpush.msra.mxu0 %v53
    %100 = vmatpush.msra.mxu0 %v52
    %101 = vmatpush.msra.mxu0 %v51
    %102 = vmatpush.msra.mxu0 %v50
    %103 = vmatpush.msra.mxu0 %v49
    %104 = vmatpush.msra.mxu0 %v48
    %105 = vmatpush.msra.mxu0 %v47
    %106 = vmatpush.msra.mxu0 %v46
    %107 = vmatpush.msra.mxu0 %v45
    %108 = vmatmul.f32.gmra.mxu0 %v32
    %v109 = vpop.f32.mrf.mxu0
    %v110 = vadd.f32 %v87, %v109
    %111 = vmatmul.f32.gmra.mxu0 %v33
    %v112 = vpop.f32.mrf.mxu0
    %v113 = vadd.f32 %v90, %v112
    %114 = vdwg.mxu0
    %115 = vst [vmem:[#allocation2] sm:$0xff] %v110
    %116 = vst [vmem:[#allocation2 + $0x8] sm:$0xff] %v113
    %117 = vmax.xlane.f32.xlu0 %v110
    %v118 = vpop.xlane.xlu0 %117
    %119 = vmax.xlane.f32.xlu0 %v113
    %v120 = vpop.xlane.xlu0 %119
    %v121 = vsub.f32 %v110, %v118
    %v122 = vsub.f32 %v113, %v120
    %v123 = vmul.f32 %v121, 1.442695
    %v124 = vpow.pop %v123
    %v125 = vmul.f32 %v122, 1.442695
    %v126 = vpow.pop %v125
    %127 = vadd.xlane.f32.xlu0 %v124
    %v128 = vpop.xlane.xlu0 %127
    %129 = vadd.xlane.f32.xlu0 %v126
    %v130 = vpop.xlane.xlu0 %129
    %v131 = vlog2.pop %v128
    %v132 = vmul.f32 %v131, 0.6931472
    %v133 = vlog2.pop %v130
    %v134 = vmul.f32 %v133, 0.6931472
    %v135 = vadd.f32 %v118, %v132
    %v136 = vadd.f32 %v120, %v134
    %137 = vset.pattern.permute.xlu0 1
    %138 = vperm.xlu0 %137, %v18
    %v139 = vpop.permute.xlu0 %138
    %140 = vset.pattern.permute.xlu0 1
    %141 = vperm.xlu0 %140, %v19
    %v142 = vpop.permute.xlu0 %141
    %vm143 = vcmp.eq.s32.totalorder %v21, %v139
    %vm144 = vcmp.eq.s32.totalorder %v21, %v142
    %v145 = vsel %vm143, 1, 0
    %v146 = vsel %vm144, 1, 0
    %v147 = vcvt.s32.f32 %v145
    %v148 = vcvt.s32.f32 %v146
    %v149 = vmul.f32 %v147, %v110
    %v150 = vmul.f32 %v148, %v113
    %151 = vadd.xlane.f32.xlu0 %v149
    %v152 = vpop.xlane.xlu0 %151
    %153 = vadd.xlane.f32.xlu0 %v150
    %v154 = vpop.xlane.xlu0 %153
    %v155 = vsub.f32 %v135, %v152
    %v156 = vsub.f32 %v136, %v154
    %vm157 = vcmask 7168
    %v158 = vsel %vm157, %v155, 0.0
    %v159 = vsel %vm157, %v156, 0.0
    %v160 = vadd.f32 %v158, %v159
    %161 = vadd.xlane.f32.xlu0 %v160
    %v162 = vpop.xlane.xlu0 %161
    %v163 = vrot.slane %v162, 4
    %v164 = vadd.f32 %v162, %v163
    %v165 = vrot.slane %v164, 2
    %v166 = vadd.f32 %v164, %v165
    %v167 = vrot.slane %v166, 1
    %v168 = vadd.f32 %v166, %v167
    %s169 = vtos %v168
    %v170 = vrcp.pop 16.0
    %v171 = vmul.f32 16.0, %v170
    %v172 = vsub.f32 1.0, %v171
    %v173 = vmul.f32 %v170, %v172
    %v174 = vadd.f32 %v170, %v173
    %vm175 = vweird.f32 %v170
    %v176 = vsel %vm175, %v170, %v174
    %s177 = vtos %v176
    %s178 = smul.f32 %s169, %s177
    %s179 = scalar_lea.smem [#allocation5], 0
    %180 = sst [smem:[%s179]] %s178
    // Predicated region
    $region14: #{bigram_forward.1} parent=1 // pred_check
      _
    $region15: #{bigram_forward.1} parent=1 // pred_check_branch
      %182 = sbr.rel (0) target = $region17
    $region16: #{bigram_forward.1} parent=1 // pred_region
      %184 = vsyncadd [#allocation3], 0
      %s185 = sshll.u32 [#allocation2], 4
      %s186 = int_to_ptr.vmem [resolvable:$true] %s185
      %s187 = sshll.u32 %s3, 4
      %s188 = int_to_ptr.hbm [resolvable:$true] %s187
      %193 = dma.vmem_to_hbm [thread:$0]  %s186, 256, %s188, [#allocation3], 128, 128, 8
    $region17: #{bigram_forward.1} parent=1 // pred_fallthru
      _
    // Predicated region
    $region18: #{bigram_forward.1} parent=1 // pred_check
      _
    $region19: #{bigram_forward.1} parent=1 // pred_check_branch
      %195 = sbr.rel (0) target = $region21
    $region20: #{bigram_forward.1} parent=1 // pred_region
      %197 = vsyncadd [#allocation4], 0
      %s199 = sshll.u32 %s4, 4
      %s200 = int_to_ptr.hbm [resolvable:$true] %s199
      %202 = dma.smem_to_hbm [#allocation5], 16, %s200, [#allocation4]
    $region21: #{bigram_forward.1} parent=1 // pred_fallthru
      _
    // Predicated region
    $region22: #{bigram_forward.1} parent=1 // pred_check
      _
    $region23: #{bigram_forward.1} parent=1 // pred_check_branch
      %204 = sbr.rel (0) target = $region25
    $region24: #{bigram_forward.1} parent=1 // pred_region
      %206 = dma.done [#allocation3], 256
    $region25: #{bigram_forward.1} parent=1 // pred_fallthru
      _
    // Predicated region
    $region26: #{bigram_forward.1} parent=1 // pred_check
      _
    $region27: #{bigram_forward.1} parent=1 // pred_check_branch
      %208 = sbr.rel (0) target = $region29
    $region28: #{bigram_forward.1} parent=1 // pred_region
      %210 = dma.done [#allocation4], 16
    $region29: #{bigram_forward.1} parent=1 // pred_fallthru
      _
    %211 = sfence
    %212 = vsyncpa [#allocation3], 1
    %213 = vsyncpa [#allocation4], 1

</llo_original>
